<compile_context>
chip_gen: v5e
topology: v5e:2x2
jax: 0.10.0
libtpu: 0.0.40
codegen_flags: <defaults>
</compile_context>

<pallas_src>
from typing import NamedTuple

import jax
import jax.numpy as jnp
from jax.experimental import pallas as pl
from jax.experimental.pallas import tpu as pltpu


def _round_up(x, m):
    return ((x + m - 1) // m) * m


def _vmem_capacity_bytes():
    """Physical VMEM per TensorCore; conservative fallback if the query fails."""
    try:
        return int(pltpu.get_tpu_info().vmem_capacity_bytes)
    except Exception:
        return 64 << 20  # v7x per-TC VMEM (smallest current generation)


# --------------------------------------------------------------------------- #
# Kernels
# --------------------------------------------------------------------------- #
def _fused_two_linear_kernel(x_ref, w1t_ref, w2t_ref, o_ref, h_acc_ref):
    """Grid = (batch_tiles, k_tiles). First matmul accumulates over the
    in_features axis into a f32 VMEM scratch; on the last k step the second
    matmul consumes the accumulator and writes the lane-dense output tile."""
    k = pl.program_id(1)

    @pl.when(k == 0)
    def _():
        h_acc_ref[...] = jnp.zeros_like(h_acc_ref)

    h_acc_ref[...] += jnp.dot(
        x_ref[...], w1t_ref[...], preferred_element_type=jnp.float32
    )

    @pl.when(k == pl.num_programs(1) - 1)
    def _():
        # Cast intermediate to the compute dtype (no-op for f32; feeds the bf16
        # MXU when inputs are bf16), keep f32 accumulation via preferred type.
        h = h_acc_ref[...].astype(w2t_ref.dtype)
        o_ref[...] = jnp.dot(
            h, w2t_ref[...], preferred_element_type=jnp.float32
        ).astype(o_ref.dtype)


def _matmul_kernel(a_ref, b_ref, o_ref, acc_ref):
    """Generic tiled matmul with f32 accumulation (fallback path where hidden
    and out_features are fully tiled, bounding VMEM residency on v7x)."""
    @pl.when(pl.program_id(2) == 0)
    def _():
        acc_ref[...] = jnp.zeros_like(acc_ref)

    acc_ref[...] += jnp.dot(
        a_ref[...], b_ref[...], preferred_element_type=jnp.float32
    )

    @pl.when(pl.program_id(2) == pl.num_programs(2) - 1)
    def _():
        o_ref[...] = acc_ref[...].astype(o_ref.dtype)


# --------------------------------------------------------------------------- #
# Wrappers
# --------------------------------------------------------------------------- #
class PreppedParams(NamedTuple):
    w1t_p: jax.Array  # [k_pad, h_pad]  (W1 transposed + zero-padded)
    w2t_p: jax.Array  # [h_pad, n_pad]  (W2 transposed + zero-padded)
    in_f: int
    hidden: int
    out_f: int
    tk: int           # reduction tile chosen at prep time (divides k_pad)


def prepare_params(w1, w2, dtype=None):
    """One-time parameter prep (hoisted out of the per-call path):
    transpose to row-major [in, out] layout and zero-pad to lane-aligned,
    tile-aligned shapes. Pad copies are skipped when already aligned.

    w1 : [hidden, in_features]   (PyTorch nn.Linear layout)
    w2 : [out_features, hidden]
    """
    hidden, in_f = w1.shape
    out_f, hidden2 = w2.shape
    assert hidden == hidden2, "fc1/fc2 shapes inconsistent"
    dtype = dtype or w1.dtype

    # Reduction tile: <=512, multiple of 128; K is padded UP to a tile multiple.
    k_pad = _round_up(in_f, 128)
    tk = max(128, (min(512, k_pad) // 128) * 128)
    k_pad = _round_up(k_pad, tk)
    h_pad = _round_up(hidden, 128)
    n_pad = _round_up(out_f, 128)

    w1t = jnp.asarray(w1, dtype).T  # [in_f, hidden]
    w2t = jnp.asarray(w2, dtype).T  # [hidden, out_f]

    if (in_f, hidden) == (k_pad, h_pad):
        w1t_p = w1t
    else:
        w1t_p = jnp.zeros((k_pad, h_pad), dtype).at[:in_f, :hidden].set(w1t)
    if (hidden, out_f) == (h_pad, n_pad):
        w2t_p = w2t
    else:
        w2t_p = jnp.zeros((h_pad, n_pad), dtype).at[:hidden, :out_f].set(w2t)

    return PreppedParams(w1t_p, w2t_p, in_f, hidden, out_f, tk)


def _fused_call(x_p, w1t_p, w2t_p, tm, tk, out_dtype, vmem_limit, cost):
    m_pad, k_pad = x_p.shape
    h_pad = w1t_p.shape[1]
    n_pad = w2t_p.shape[1]
    grid = (m_pad // tm, k_pad // tk)
    return pl.pallas_call(
        _fused_two_linear_kernel,
        out_shape=jax.ShapeDtypeStruct((m_pad, n_pad), out_dtype),
        grid_spec=pltpu.PrefetchScalarGridSpec(
            num_scalar_prefetch=0,
            grid=grid,
            in_specs=[
                pl.BlockSpec((tm, tk), lambda i, k: (i, k)),        # x tile
                pl.BlockSpec((tk, h_pad), lambda i, k: (k, 0)),     # W1.T tile
                pl.BlockSpec((h_pad, n_pad), lambda i, k: (0, 0)),  # W2.T resident
            ],
            out_specs=pl.BlockSpec((tm, n_pad), lambda i, k: (i, 0)),
            scratch_shapes=[pltpu.VMEM((tm, h_pad), jnp.float32)],
        ),
        compiler_params=pltpu.CompilerParams(
            dimension_semantics=("parallel", "arbitrary"),
            vmem_limit_bytes=vmem_limit,
        ),
        cost_estimate=cost,
    )(x_p, w1t_p, w2t_p)


def _tiled_matmul(a, b, out_dtype, vmem_budget):
    """Generic (M,K)@(K,N) tiled matmul. Hidden/output dims are fully tiled, so
    residency stays bounded regardless of layer width (v7x 64 MiB safeguard)."""
    M, K = a.shape
    K2, N = b.shape
    assert K == K2
    dtype = a.dtype
    bpe = jnp.dtype(dtype).itemsize

    m_pad = _round_up(M, 8)
    k_pad = _round_up(K, 128)
    n_pad = _round_up(N, 128)
    tm = max(8, (min(256, m_pad) // 8) * 8)
    tk = max(128, (min(512, k_pad) // 128) * 128)
    tn = max(128, (min(512, n_pad) // 128) * 128)
    m_pad = _round_up(m_pad, tm)
    k_pad = _round_up(k_pad, tk)
    n_pad = _round_up(n_pad, tn)
    if m_pad // tm == 1 and tm % 16 == 0:
        tm //= 2  # give the v7x megacore 'parallel' axis >=2 programs

    a_p = a if (M, K) == (m_pad, k_pad) else \
        jnp.zeros((m_pad, k_pad), dtype).at[:M, :K].set(a)
    b_p = b if (K, N) == (k_pad, n_pad) else \
        jnp.zeros((k_pad, n_pad), dtype).at[:K, :N].set(b)

    need = (2 * tm * tk + 2 * tk * tn + 2 * tm * tn) * bpe + tm * tn * 4
    vmem_limit = int(min(max(need + (4 << 20), 16 << 20), vmem_budget))
    cost = pl.CostEstimate(
        flops=2 * m_pad * k_pad * n_pad,
        transcendentals=0,
        bytes_accessed=(m_pad * k_pad + k_pad * n_pad + m_pad * n_pad) * bpe,
    )

    out_p = pl.pallas_call(
        _matmul_kernel,
        out_shape=jax.ShapeDtypeStruct((m_pad, n_pad), out_dtype),
        grid_spec=pltpu.PrefetchScalarGridSpec(
            num_scalar_prefetch=0,
            grid=(m_pad // tm, n_pad // tn, k_pad // tk),
            in_specs=[
                pl.BlockSpec((tm, tk), lambda i, j, k: (i, k)),
                pl.BlockSpec((tk, tn), lambda i, j, k: (k, j)),
            ],
            out_specs=pl.BlockSpec((tm, tn), lambda i, j, k: (i, j)),
            scratch_shapes=[pltpu.VMEM((tm, tn), jnp.float32)],
        ),
        compiler_params=pltpu.CompilerParams(
            dimension_semantics=("parallel", "parallel", "arbitrary"),
            vmem_limit_bytes=vmem_limit,
        ),
        cost_estimate=cost,
    )(a_p, b_p)
    return out_p[:M, :N]


def my_model_forward(x, prepped: PreppedParams, *, force_pallas=False):
    """Pallas equivalent of MyModel.forward: fc2(fc1(x)), both bias-free.

    x       : [batch, in_features]
    prepped : output of prepare_params (weights transposed/padded once).
    """
    batch, in_f = x.shape
    assert in_f == prepped.in_f, "x feature dim mismatch"
    dtype = x.dtype
    k_pad, h_pad = prepped.w1t_p.shape
    n_pad = prepped.w2t_p.shape[1]
    hidden, out_f = prepped.hidden, prepped.out_f
    tk = prepped.tk

    # ---- fast path: tiny problems are pure launch/pad/DMA overhead ----------
    if not force_pallas and batch * k_pad * h_pad < (1 << 20):
        h = x @ prepped.w1t_p[:in_f, :hidden].astype(dtype)
        return h @ prepped.w2t_p[:hidden, :out_f].astype(dtype)

    # ---- batch tiling: pad M UP to a multiple of the chosen tile ------------
    m_pad = _round_up(batch, 8)
    tm = max(8, (min(256, m_pad) // 8) * 8)
    m_pad = _round_up(m_pad, tm)
    if m_pad // tm == 1 and tm % 16 == 0:
        tm //= 2  # v7x megacore: >=2 programs on the 'parallel' axis

    x_p = x if (batch, in_f) == (m_pad, k_pad) else \
        jnp.zeros((m_pad, k_pad), dtype).at[:batch, :in_f].set(x)

    bpe = jnp.dtype(dtype).itemsize
    vmem_budget = int(0.75 * _vmem_capacity_bytes())  # ~96 MiB v5e/v6e, ~48 MiB v7x

    # Accurate fused-path residency: double-buffered x / W1.T tiles, the
    # (compiler-double-buffered) resident W2.T, the output tile, and the f32
    # accumulator. No extra 2x headroom factor on top.
    fused_need = (2 * tm * tk + 2 * tk * h_pad
                  + 2 * h_pad * n_pad + 2 * tm * n_pad) * bpe \
                 + tm * h_pad * 4

    flops = 2 * m_pad * k_pad * h_pad + 2 * m_pad * h_pad * n_pad
    bytes_accessed = (m_pad * k_pad + k_pad * h_pad + h_pad * n_pad
                      + m_pad * n_pad) * bpe
    cost = pl.CostEstimate(flops=flops, transcendentals=0,
                           bytes_accessed=bytes_accessed)

    if fused_need <= vmem_budget:
        vmem_limit = int(min(max(fused_need + (4 << 20), 16 << 20), vmem_budget))
        out_p = _fused_call(x_p, prepped.w1t_p, prepped.w2t_p, tm, tk,
                            dtype, vmem_limit, cost)
    else:
        # Hidden / out_features too large to keep resident (v7x 64 MiB VMEM):
        # run two generic tiled matmuls instead of the fused kernel.
        h_p = _tiled_matmul(x_p, prepped.w1t_p, dtype, vmem_budget)
        out_p = _tiled_matmul(h_p, prepped.w2t_p, dtype, vmem_budget)

    return out_p[:batch, :out_f]


# --------------------------------------------------------------------------- #
# Self-test
# --------------------------------------------------------------------------- #
if __name__ == "__main__":
    key = jax.random.PRNGKey(0)
    k_x, k_w1, k_w2, k_x2, k_w3, k_w4 = jax.random.split(key, 6)

    # ---- literal MyModel size: nn.Linear(2,2) twice, batch=8 ----------------
    batch, dim = 8, 2
    x = jax.random.normal(k_x, (batch, dim), dtype=jnp.float32)
    w1 = jax.random.uniform(k_w1, (dim, dim), jnp.float32, minval=-0.5, maxval=0.5)
    w2 = jax.random.uniform(k_w2, (dim, dim), jnp.float32, minval=-0.5, maxval=0.5)

    prepped = prepare_params(w1, w2)       # one-time weight prep (amortized)
    ref = (x @ w1.T) @ w2.T

    # Auto path at this size takes the plain-jnp bypass (kernel would be pure overhead).
    out_fast = my_model_forward(x, prepped)
    jax.block_until_ready(out_fast)
    assert out_fast.shape == ref.shape
    assert jnp.allclose(out_fast, ref, atol=1e-4, rtol=1e-4), "fast-path mismatch"

    # Force the fused Pallas kernel at the toy size to exercise it end-to-end.
    out_pallas = my_model_forward(x, prepped, force_pallas=True)
    jax.block_until_ready(out_pallas)
    assert out_pallas.shape == ref.shape
    assert jnp.allclose(out_pallas, ref, atol=1e-4, rtol=1e-4), "pallas mismatch (toy)"

    # ---- a modestly larger, unaligned shape to exercise padding + tiling ----
    b2, i2, h2, o2 = 160, 96, 192, 80
    x2 = jax.random.normal(k_x2, (b2, i2), dtype=jnp.float32)
    w3 = jax.random.uniform(k_w3, (h2, i2), jnp.float32, minval=-0.1, maxval=0.1)
    w4 = jax.random.uniform(k_w4, (o2, h2), jnp.float32, minval=-0.1, maxval=0.1)
    prepped2 = prepare_params(w3, w4)
    out2 = my_model_forward(x2, prepped2)  # auto path -> fused Pallas kernel
    jax.block_until_ready(out2)
    ref2 = (x2 @ w3.T) @ w4.T
    assert out2.shape == ref2.shape
    # Looser tolerance: MXU matmul precision vs XLA default may differ slightly.
    assert jnp.allclose(out2, ref2, atol=2e-2, rtol=2e-2), "pallas mismatch (tiled)"

    print("KERNEL_OK")
</pallas_src>

<mosaic_0001>
module attributes {stable_mosaic.version = 11 : i64} {
  func.func @_fused_two_linear_kernel(%arg0: i32, %arg1: i32, %arg2: memref<8x128xf32, #tpu.memory_space<vmem>>, %arg3: memref<128x128xf32, #tpu.memory_space<vmem>>, %arg4: memref<128x128xf32, #tpu.memory_space<vmem>>, %arg5: memref<8x128xf32, #tpu.memory_space<vmem>>, %arg6: memref<8x128xf32, #tpu.memory_space<vmem>>) attributes {dimension_semantics = [#tpu.dimension_semantics<parallel>, #tpu.dimension_semantics<arbitrary>], iteration_bounds = array<i64: 1, 1>, scalar_prefetch = 0 : i64, scratch_operands = 1 : i64, tpu.core_type = #tpu.core_type<tc>, window_params = [{transform_indices = @transform_0, window_bounds = array<i64: 8, 128>}, {transform_indices = @transform_1, window_bounds = array<i64: 128, 128>}, {pipeline_mode = #tpu.pipeline_mode<synchronous>, transform_indices = @transform_2, window_bounds = array<i64: 128, 128>}, {transform_indices = @transform_3, window_bounds = array<i64: 8, 128>}]} {
    %c0_i32 = arith.constant 0 : i32
    %0 = arith.cmpi eq, %arg1, %c0_i32 : i32
    %1 = arith.extui %0 : i1 to i32
    %c0_i32_0 = arith.constant 0 : i32
    %2 = arith.cmpi ne, %1, %c0_i32_0 : i32
    scf.if %2 {
      %cst_10 = arith.constant 0.000000e+00 : f32
      %12 = vector.broadcast %cst_10 : f32 to vector<8x128xf32>
      %c0_11 = arith.constant 0 : index
      %c0_12 = arith.constant 0 : index
      %13 = vector.load %arg6[%c0_11, %c0_12] : memref<8x128xf32, #tpu.memory_space<vmem>>, vector<8x128xf32>
      tpu.vector_store %arg6[%c0_11, %c0_12], %12 {strides = array<i32>} : memref<8x128xf32, #tpu.memory_space<vmem>>, vector<8x128xf32>,
    } else {
    }
    %c0 = arith.constant 0 : index
    %c0_1 = arith.constant 0 : index
    %3 = vector.load %arg6[%c0, %c0_1] : memref<8x128xf32, #tpu.memory_space<vmem>>, vector<8x128xf32>
    %c0_2 = arith.constant 0 : index
    %c0_3 = arith.constant 0 : index
    %4 = vector.load %arg2[%c0_2, %c0_3] : memref<8x128xf32, #tpu.memory_space<vmem>>, vector<8x128xf32>
    %c0_4 = arith.constant 0 : index
    %c0_5 = arith.constant 0 : index
    %5 = vector.load %arg3[%c0_4, %c0_5] : memref<128x128xf32, #tpu.memory_space<vmem>>, vector<128x128xf32>
    %cst = arith.constant dense<0.000000e+00> : vector<8x128xf32>
    %6 = tpu.matmul %4, %5, %cst {dimension_numbers = #tpu.dot_dimension_numbers<[1], [0], [0], [1], [0, 0, 1, 1], [], []>} : vector<8x128xf32>, vector<128x128xf32>, vector<8x128xf32> -> vector<8x128xf32>
    %7 = arith.addf %3, %6 : vector<8x128xf32>
    %c0_6 = arith.constant 0 : index
    %c0_7 = arith.constant 0 : index
    %8 = vector.load %arg6[%c0_6, %c0_7] : memref<8x128xf32, #tpu.memory_space<vmem>>, vector<8x128xf32>
    tpu.vector_store %arg6[%c0_6, %c0_7], %7 {strides = array<i32>} : memref<8x128xf32, #tpu.memory_space<vmem>>, vector<8x128xf32>,
    %c0_i32_8 = arith.constant 0 : i32
    %9 = arith.cmpi eq, %arg1, %c0_i32_8 : i32
    %10 = arith.extui %9 : i1 to i32
    %c0_i32_9 = arith.constant 0 : i32
    %11 = arith.cmpi ne, %10, %c0_i32_9 : i32
    scf.if %11 {
      %c0_10 = arith.constant 0 : index
      %c0_11 = arith.constant 0 : index
      %12 = vector.load %arg6[%c0_10, %c0_11] : memref<8x128xf32, #tpu.memory_space<vmem>>, vector<8x128xf32>
      %c0_12 = arith.constant 0 : index
      %c0_13 = arith.constant 0 : index
      %13 = vector.load %arg4[%c0_12, %c0_13] : memref<128x128xf32, #tpu.memory_space<vmem>>, vector<128x128xf32>
      %cst_14 = arith.constant dense<0.000000e+00> : vector<8x128xf32>
      %14 = tpu.matmul %12, %13, %cst_14 {dimension_numbers = #tpu.dot_dimension_numbers<[1], [0], [0], [1], [0, 0, 1, 1], [], []>} : vector<8x128xf32>, vector<128x128xf32>, vector<8x128xf32> -> vector<8x128xf32>
      %c0_15 = arith.constant 0 : index
      %c0_16 = arith.constant 0 : index
      %15 = vector.load %arg5[%c0_15, %c0_16] : memref<8x128xf32, #tpu.memory_space<vmem>>, vector<8x128xf32>
      tpu.vector_store %arg5[%c0_15, %c0_16], %14 {strides = array<i32>} : memref<8x128xf32, #tpu.memory_space<vmem>>, vector<8x128xf32>,
    } else {
    }
    return
  }
  func.func @transform_0(%arg0: i32, %arg1: i32) -> (i32, i32) {
    %c0_i32 = arith.constant 0 : i32
    return %arg0, %arg1 : i32, i32
  }
  func.func @transform_1(%arg0: i32, %arg1: i32) -> (i32, i32) {
    %c0_i32 = arith.constant 0 : i32
    %c0_i32_0 = arith.constant 0 : i32
    return %arg1, %c0_i32 : i32, i32
  }
  func.func @transform_2(%arg0: i32, %arg1: i32) -> (i32, i32) {
    %c0_i32 = arith.constant 0 : i32
    %c0_i32_0 = arith.constant 0 : i32
    %c0_i32_1 = arith.constant 0 : i32
    return %c0_i32, %c0_i32_0 : i32, i32
  }
  func.func @transform_3(%arg0: i32, %arg1: i32) -> (i32, i32) {
    %c0_i32 = arith.constant 0 : i32
    %c0_i32_0 = arith.constant 0 : i32
    return %arg0, %c0_i32 : i32, i32
  }
}

</mosaic_0001>

<llo_original>
// kernel: tpu_custom_call.1
$region0: #{tpu_custom_call.1}
  #allocation0 [shape = 'u32[]', space=smem, size = 0x4, offset = 0x4, fixed_abs, tag = 'smem constant byte address 0x4 - core index']
  #allocation1 [shape = 'u32[72,128]{1,0:T(1,128)}', space=vmem, size = 0x9000, scoped, tag = 'internal scratch']
  #allocation2 [shape = 'f32[8,128]{1,0:T(8,128)}', space=vmem, size = 0x1000, scoped, tag = 'scratch operand']
  %s0 = inlined_call_operand.hbm [shape: f32[8,128], index: 0, kind: input, shape index: {}]
  %s1 = inlined_call_operand.hbm [shape: f32[128,128], index: 1, kind: input, shape index: {}]
  %s2 = inlined_call_operand.hbm [shape: f32[128,128], index: 2, kind: input, shape index: {}]
  %s3 = inlined_call_operand.hbm [shape: f32[8,128], index: 3, kind: output, shape index: {}]
  %s4 = sld [smem:[#allocation0]]
  $region42: #{tpu_custom_call.1} parent=0
    _
  %s6 = ssub.s32 1, %s4
  %s7 = scalar_select 0, %s6, %s4
  $region1: #{tpu_custom_call.1} parent=0
    #allocation3 [shape = 'u8[4096]{0}', space=vmem, size = 0x1000, scoped, tag = 'input window, operand 0, single buffered']
    #allocation4 [shape = 's32[1]{0}', space=sflag, size = 0x4, scoped, tag = 'scoped memory for tpu_custom_call.1']
    #allocation5 [shape = 's32[1]{0}', space=sflag, size = 0x4, scoped, tag = 'scoped memory for tpu_custom_call.1']
    #allocation6 [shape = 'u8[65536]{0}', space=vmem, size = 0x10000, scoped, tag = 'input window, operand 1, single buffered']
    #allocation7 [shape = 's32[1]{0}', space=sflag, size = 0x4, scoped, tag = 'scoped memory for tpu_custom_call.1']
    #allocation8 [shape = 'u8[65536]{0}', space=vmem, size = 0x10000, scoped, tag = 'input window, operand 2, single buffered']
    #allocation9 [shape = 'u8[4096]{0}', space=vmem, size = 0x1000, scoped, tag = 'output window, operand 0, single buffered']
    %8 = vsyncpa [#allocation4], 0
    %9 = vsyncpa [#allocation7], 0
    %10 = vsyncpa [#allocation5], 0
    // Predicated region
    $region2: #{tpu_custom_call.1} parent=1 // pred_check
      _
    $region3: #{tpu_custom_call.1} parent=1 // pred_check_branch
      %12 = sbr.rel (0) target = $region5
    $region4: #{tpu_custom_call.1} parent=1 // pred_region
      %14 = vsyncadd [#allocation4], 0
      %s16 = sshll.u32 %s0, 4
      %s17 = int_to_ptr.hbm [resolvable:$true] %s16
      %s18 = sshll.u32 [#allocation3], 4
      %s19 = int_to_ptr.vmem [resolvable:$true] %s18
      %21 = dma.hbm_to_vmem [thread:$0]  %s17, 128, %s19, [#allocation4]
    $region5: #{tpu_custom_call.1} parent=1 // pred_fallthru
      _
    // Predicated region
    $region6: #{tpu_custom_call.1} parent=1 // pred_check
      _
    $region7: #{tpu_custom_call.1} parent=1 // pred_check_branch
      %23 = sbr.rel (0) target = $region9
    $region8: #{tpu_custom_call.1} parent=1 // pred_region
      %25 = vsyncadd [#allocation7], 0
      %s26 = sshll.u32 %s1, 4
      %s27 = int_to_ptr.hbm [resolvable:$true] %s26
      %s28 = sshll.u32 [#allocation6], 4
      %s29 = int_to_ptr.vmem [resolvable:$true] %s28
      %34 = dma.hbm_to_vmem [thread:$0]  %s27, 2048, %s29, [#allocation7], 128, 128, 8
    $region9: #{tpu_custom_call.1} parent=1 // pred_fallthru
      _
    // Predicated region
    $region10: #{tpu_custom_call.1} parent=1 // pred_check
      _
    $region11: #{tpu_custom_call.1} parent=1 // pred_check_branch
      %36 = sbr.rel (0) target = $region13
    $region12: #{tpu_custom_call.1} parent=1 // pred_region
      %38 = vsyncadd [#allocation7], 0
      %s39 = sshll.u32 %s2, 4
      %s40 = int_to_ptr.hbm [resolvable:$true] %s39
      %s41 = sshll.u32 [#allocation8], 4
      %s42 = int_to_ptr.vmem [resolvable:$true] %s41
      %47 = dma.hbm_to_vmem [thread:$0]  %s40, 2048, %s42, [#allocation7], 128, 128, 8
    $region13: #{tpu_custom_call.1} parent=1 // pred_fallthru
      _
    // Predicated region
    $region14: #{tpu_custom_call.1} parent=1 // pred_check
      _
    $region15: #{tpu_custom_call.1} parent=1 // pred_check_branch
      %49 = sbr.rel (0) target = $region17
    $region16: #{tpu_custom_call.1} parent=1 // pred_region
      %51 = dma.done [#allocation4], 128
    $region17: #{tpu_custom_call.1} parent=1 // pred_fallthru
      _
    // Predicated region
    $region18: #{tpu_custom_call.1} parent=1 // pred_check
      _
    $region19: #{tpu_custom_call.1} parent=1 // pred_check_branch
      %53 = sbr.rel (0) target = $region21
    $region20: #{tpu_custom_call.1} parent=1 // pred_region
      %55 = dma.done [#allocation7], 2048
    $region21: #{tpu_custom_call.1} parent=1 // pred_fallthru
      _
    // Predicated region
    $region22: #{tpu_custom_call.1} parent=1 // pred_check
      _
    $region23: #{tpu_custom_call.1} parent=1 // pred_check_branch
      %57 = sbr.rel (0) target = $region25
    $region24: #{tpu_custom_call.1} parent=1 // pred_region
      %59 = dma.done [#allocation7], 2048
    $region25: #{tpu_custom_call.1} parent=1 // pred_fallthru
      _
    %p60 = scmp.eq.s32.totalorder 0, 0
    // Predicated region
    $region26: #{tpu_custom_call.1} parent=1 // pred_check
      %p61 = pneg %p60
    $region27: #{tpu_custom_call.1} parent=1 // pred_check_branch
      %63 = sbr.rel (%p61) target = $region29
    $region28: #{tpu_custom_call.1} parent=1 // pred_region
      %64 = vst [vmem:[#allocation2] sm:$0xff] 0.0
    $region29: #{tpu_custom_call.1} parent=1 // pred_fallthru
      _
    %v65 = vld [vmem:[#allocation2] sm:$0xff]
    %v66 = vld [vmem:[#allocation3] sm:$0xff]
    %v67 = vld [vmem:[#allocation6] sm:$0xff]
    %v68 = vld [vmem:[#allocation6 + $0x8] sm:$0xff]
    %v69 = vld [vmem:[#allocation6 + $0x10] sm:$0xff]
    %v70 = vld [vmem:[#allocation6 + $0x18] sm:$0xff]
    %v71 = vld [vmem:[#allocation6 + $0x20] sm:$0xff]
    %v72 = vld [vmem:[#allocation6 + $0x28] sm:$0xff]
    %v73 = vld [vmem:[#allocation6 + $0x30] sm:$0xff]
    %v74 = vld [vmem:[#allocation6 + $0x38] sm:$0xff]
    %v75 = vld [vmem:[#allocation6 + $0x40] sm:$0xff]
    %v76 = vld [vmem:[#allocation6 + $0x48] sm:$0xff]
    %v77 = vld [vmem:[#allocation6 + $0x50] sm:$0xff]
    %v78 = vld [vmem:[#allocation6 + $0x58] sm:$0xff]
    %v79 = vld [vmem:[#allocation6 + $0x60] sm:$0xff]
    %v80 = vld [vmem:[#allocation6 + $0x68] sm:$0xff]
    %v81 = vld [vmem:[#allocation6 + $0x70] sm:$0xff]
    %v82 = vld [vmem:[#allocation6 + $0x78] sm:$0xff]
    %83 = vmatpush.msra.mxu0 %v82
    %84 = vmatpush.msra.mxu0 %v81
    %85 = vmatpush.msra.mxu0 %v80
    %86 = vmatpush.msra.mxu0 %v79
    %87 = vmatpush.msra.mxu0 %v78
    %88 = vmatpush.msra.mxu0 %v77
    %89 = vmatpush.msra.mxu0 %v76
    %90 = vmatpush.msra.mxu0 %v75
    %91 = vmatpush.msra.mxu0 %v74
    %92 = vmatpush.msra.mxu0 %v73
    %93 = vmatpush.msra.mxu0 %v72
    %94 = vmatpush.msra.mxu0 %v71
    %95 = vmatpush.msra.mxu0 %v70
    %96 = vmatpush.msra.mxu0 %v69
    %97 = vmatpush.msra.mxu0 %v68
    %98 = vmatpush.msra.mxu0 %v67
    %99 = vmatmul.f32.gmra.mxu0 %v66
    %v100 = vpop.f32.mrf.mxu0
    %v101 = vadd.f32 0.0, %v100
    %102 = vdwg.mxu0
    %v103 = vadd.f32 %v65, %v101
    %104 = vst [vmem:[#allocation2] sm:$0xff] %v103
    // Predicated region
    $region30: #{tpu_custom_call.1} parent=1 // pred_check
      %p105 = pneg %p60
    $region31: #{tpu_custom_call.1} parent=1 // pred_check_branch
      %107 = sbr.rel (%p105) target = $region33
    $region32: #{tpu_custom_call.1} parent=1 // pred_region
      %v108 = vld [vmem:[#allocation2] sm:$0xff]
      %v109 = vld [vmem:[#allocation8] sm:$0xff]
      %v110 = vld [vmem:[#allocation8 + $0x8] sm:$0xff]
      %v111 = vld [vmem:[#allocation8 + $0x10] sm:$0xff]
      %v112 = vld [vmem:[#allocation8 + $0x18] sm:$0xff]
      %v113 = vld [vmem:[#allocation8 + $0x20] sm:$0xff]
      %v114 = vld [vmem:[#allocation8 + $0x28] sm:$0xff]
      %v115 = vld [vmem:[#allocation8 + $0x30] sm:$0xff]
      %v116 = vld [vmem:[#allocation8 + $0x38] sm:$0xff]
      %v117 = vld [vmem:[#allocation8 + $0x40] sm:$0xff]
      %v118 = vld [vmem:[#allocation8 + $0x48] sm:$0xff]
      %v119 = vld [vmem:[#allocation8 + $0x50] sm:$0xff]
      %v120 = vld [vmem:[#allocation8 + $0x58] sm:$0xff]
      %v121 = vld [vmem:[#allocation8 + $0x60] sm:$0xff]
      %v122 = vld [vmem:[#allocation8 + $0x68] sm:$0xff]
      %v123 = vld [vmem:[#allocation8 + $0x70] sm:$0xff]
      %v124 = vld [vmem:[#allocation8 + $0x78] sm:$0xff]
      %125 = vmatpush.msra.mxu0 %v124
      %126 = vmatpush.msra.mxu0 %v123
      %127 = vmatpush.msra.mxu0 %v122
      %128 = vmatpush.msra.mxu0 %v121
      %129 = vmatpush.msra.mxu0 %v120
      %130 = vmatpush.msra.mxu0 %v119
      %131 = vmatpush.msra.mxu0 %v118
      %132 = vmatpush.msra.mxu0 %v117
      %133 = vmatpush.msra.mxu0 %v116
      %134 = vmatpush.msra.mxu0 %v115
      %135 = vmatpush.msra.mxu0 %v114
      %136 = vmatpush.msra.mxu0 %v113
      %137 = vmatpush.msra.mxu0 %v112
      %138 = vmatpush.msra.mxu0 %v111
      %139 = vmatpush.msra.mxu0 %v110
      %140 = vmatpush.msra.mxu0 %v109
      %141 = vmatmul.f32.gmra.mxu0 %v108
      %v142 = vpop.f32.mrf.mxu0
      %v143 = vadd.f32 0.0, %v142
      %144 = vdwg.mxu0
      %145 = vst [vmem:[#allocation9] sm:$0xff] %v143
    $region33: #{tpu_custom_call.1} parent=1 // pred_fallthru
      _
    // Predicated region
    $region34: #{tpu_custom_call.1} parent=1 // pred_check
      _
    $region35: #{tpu_custom_call.1} parent=1 // pred_check_branch
      %147 = sbr.rel (0) target = $region37
    $region36: #{tpu_custom_call.1} parent=1 // pred_region
      %149 = vsyncadd [#allocation5], 0
      %s151 = sshll.u32 [#allocation9], 4
      %s152 = int_to_ptr.vmem [resolvable:$true] %s151
      %s153 = sshll.u32 %s3, 4
      %s154 = int_to_ptr.hbm [resolvable:$true] %s153
      %156 = dma.vmem_to_hbm [thread:$0]  %s152, 128, %s154, [#allocation5]
    $region37: #{tpu_custom_call.1} parent=1 // pred_fallthru
      _
    // Predicated region
    $region38: #{tpu_custom_call.1} parent=1 // pred_check
      _
    $region39: #{tpu_custom_call.1} parent=1 // pred_check_branch
      %158 = sbr.rel (0) target = $region41
    $region40: #{tpu_custom_call.1} parent=1 // pred_region
      %160 = dma.done [#allocation5], 128
    $region41: #{tpu_custom_call.1} parent=1 // pred_fallthru
      _
    %161 = vsyncpa [#allocation4], 1
    %162 = vsyncpa [#allocation7], 1
    %163 = vsyncpa [#allocation5], 1

</llo_original>
